<compile_context>
chip_gen: v6e
topology: v6e:2x2x1
jax: 0.10.0
libtpu: 0.0.40
codegen_flags: <defaults>
</compile_context>

<pallas_src>
import functools

import numpy as np
import jax
import jax.numpy as jnp
from jax.experimental import pallas as pl
from jax.experimental.pallas import tpu as pltpu


def _round_up(n, m):
    return -(-n // m) * m


def _cdiv(a, b):
    return -(-a // b)


def _clip_2fc_kernel(x_ref, w1_ref, b1_ref, w2_ref, b2_ref, out_ref):
    # Cast the streamed f32 x tile to bf16 on the VPU (hidden under MXU slack).
    x_bf = x_ref[...].astype(jnp.bfloat16)
    # fc1: (tb, D_in)bf16 @ (D_in, H)bf16 -> f32 accumulation on the MXU.
    h = jnp.dot(x_bf, w1_ref[...], preferred_element_type=jnp.float32)
    # bias add + ReLU in f32 (v5e VPU has no bf16 path).
    h = jnp.maximum(h + b1_ref[...], 0.0)
    # dropout(p=0.1): identity at inference time (module.eval() semantics).
    # TODO(synk): training-mode dropout (pltpu.prng_random_bits mask) not emitted.
    # fc2: (tb, H)bf16 @ (H, D_out_p)bf16 -> f32 accumulation.
    o = jnp.dot(h.astype(jnp.bfloat16), w2_ref[...],
                preferred_element_type=jnp.float32)
    out_ref[...] = (o + b2_ref[...]).astype(out_ref.dtype)


def prepare_clip_2fc_params(w1, b1, w2, b2):
    """One-time parameter prep -- call at model load, NOT per forward.

    Returns bf16 MXU weights, biases as (1, N) f32 rows, and fc2 weight/bias
    zero-padded along D_out to a 128 multiple so the kernel's output tile is
    lane-dense.  Zero-padded columns contribute nothing and are sliced off.
    """
    D_in, H = w1.shape
    D_out = w2.shape[1]
    D_out_p = _round_up(max(D_out, 128), 128)
    w1_bf = w1.astype(jnp.bfloat16)
    w2_p = jnp.zeros((H, D_out_p), jnp.bfloat16).at[:, :D_out].set(
        w2.astype(jnp.bfloat16))
    b1_2d = b1.astype(jnp.float32).reshape(1, H)
    b2_p = jnp.zeros((1, D_out_p), jnp.float32).at[0, :D_out].set(
        b2.astype(jnp.float32))
    return w1_bf, b1_2d, w2_p, b2_p, D_out


@functools.partial(jax.jit, static_argnames=("d_out", "out_dtype", "tb_max"))
def clip_2fc_forward(x, w1_bf, b1_2d, w2_p, b2_p, *,
                     d_out, out_dtype=jnp.float32, tb_max=512):
    """x: (B, D_in) f32; prepped params from prepare_clip_2fc_params."""
    B, D_in = x.shape
    H = w1_bf.shape[1]
    D_out_p = w2_p.shape[1]
    out_isz = np.dtype(out_dtype).itemsize

    # NOTE: real CLIP dims (D_in=768/1024, H=3072/4096) are 128-aligned; at the
    # toy 32/32/16 test shapes the MXU K/N extents are under-filled and the
    # call is launch/latency bound regardless of tiling choices.

    # --- chip VMEM budget ----------------------------------------------------
    try:
        vmem_cap = int(pltpu.get_tpu_info().vmem_capacity_bytes)
    except Exception:  # pragma: no cover - conservative fallback (v7x per-TC)
        vmem_cap = 64 << 20
    # Resident, single-buffered weights + biases (pl.Buffered(1) below).
    w_bytes = (w1_bf.size * 2 + w2_p.size * 2 + b1_2d.size * 4 + b2_p.size * 4)

    # --- batch tiling ----------------------------------------------------------
    steps = max(1, _cdiv(B, tb_max))
    if B >= 32:
        steps = max(steps, 2)          # >=2 grid steps: pipelining + v7x 2-TC sharding
        if steps % 2:
            steps += 1                 # even step count splits cleanly across 2 TCs
    tb = _round_up(_cdiv(B, steps), 16)   # bf16 sublane packing wants 16-row tiles
    tb = min(tb, _round_up(B, 8))         # never exceed the (8-aligned) batch

    def _footprint(t):
        # double-buffered streamed x / out tiles + single-buffered weights
        return w_bytes + 2 * t * D_in * 4 + 2 * t * D_out_p * out_isz

    while tb > 16 and _footprint(tb) > int(0.8 * vmem_cap):
        tb = max(16, _round_up(tb // 2, 16))
    grid = (_cdiv(B, tb),)             # ragged last block is masked by Pallas
    # TODO(synk): if tb*H*4 (the f32 intermediate h) exceeds a few MiB
    # (H >= 4096-class), tile H inside the kernel with an inner fori_loop and a
    # (tb, D_out_p) f32 VMEM accumulator instead of shrinking tb.

    vmem_limit = int(min(max(_footprint(tb) + (4 << 20), 16 << 20),
                         int(0.9 * vmem_cap)))

    cost = pl.CostEstimate(
        flops=2 * B * D_in * H + 2 * B * H * D_out_p,
        transcendentals=0,
        bytes_accessed=(B * D_in * 4 + w1_bf.size * 2 + w2_p.size * 2
                        + b1_2d.size * 4 + b2_p.size * 4 + B * D_out_p * out_isz),
    )

    resident = dict(pipeline_mode=pl.Buffered(1))   # constant block index -> 1 buffer
    out_p = pl.pallas_call(
        _clip_2fc_kernel,
        out_shape=jax.ShapeDtypeStruct((B, D_out_p), out_dtype),
        grid_spec=pl.GridSpec(
            grid=grid,
            in_specs=[
                pl.BlockSpec((tb, D_in), lambda i: (i, 0)),                # x: streamed
                pl.BlockSpec((D_in, H), lambda i: (0, 0), **resident),     # W1 resident
                pl.BlockSpec((1, H), lambda i: (0, 0), **resident),        # b1 resident
                pl.BlockSpec((H, D_out_p), lambda i: (0, 0), **resident),  # W2 resident
                pl.BlockSpec((1, D_out_p), lambda i: (0, 0), **resident),  # b2 resident
            ],
            out_specs=pl.BlockSpec((tb, D_out_p), lambda i: (i, 0)),
        ),
        compiler_params=pltpu.CompilerParams(
            # Batch tiles are independent -> shard across TCs on v7x megacore.
            dimension_semantics=("parallel",),
            vmem_limit_bytes=vmem_limit),
        cost_estimate=cost,
    )(x, w1_bf, b1_2d, w2_p, b2_p)

    # Strip the lane padding (batch is never padded -- ragged block is masked).
    return out_p[:, :d_out]


def reference_forward_f32(x, w1, b1, w2, b2):
    h = jnp.maximum(x @ w1 + b1, 0.0)
    return h @ w2 + b2


def reference_forward_bf16(x, w1, b1, w2, b2):
    # Mirrors the kernel's dtype strategy (bf16 operands, f32 accumulate).
    h = jnp.dot(x.astype(jnp.bfloat16), w1.astype(jnp.bfloat16),
                preferred_element_type=jnp.float32) + b1
    h = jnp.maximum(h, 0.0)
    o = jnp.dot(h.astype(jnp.bfloat16), w2.astype(jnp.bfloat16),
                preferred_element_type=jnp.float32) + b2
    return o


if __name__ == "__main__":
    # Small shapes consistent with the module: input_dim=32, hidden_dim=32, output_dim=16.
    B, D_in, H, D_out = 8, 32, 32, 16

    key = jax.random.PRNGKey(0)
    kx, k1, kb1, k2, kb2 = jax.random.split(key, 5)

    x = jax.random.normal(kx, (B, D_in), dtype=jnp.float32)

    # Deterministic param init (Kaiming-uniform-ish bounds like nn.Linear).
    bound1 = 1.0 / (D_in ** 0.5)
    w1 = jax.random.uniform(k1, (D_in, H), jnp.float32, -bound1, bound1)
    b1 = jax.random.uniform(kb1, (H,), jnp.float32, -bound1, bound1)
    bound2 = 1.0 / (H ** 0.5)
    w2 = jax.random.uniform(k2, (H, D_out), jnp.float32, -bound2, bound2)
    b2 = jax.random.uniform(kb2, (D_out,), jnp.float32, -bound2, bound2)

    # One-time parameter prep, done OUTSIDE the per-call forward path.
    w1_bf, b1_2d, w2_p, b2_p, d_out = prepare_clip_2fc_params(w1, b1, w2, b2)
    w1_bf, b1_2d, w2_p, b2_p = jax.block_until_ready((w1_bf, b1_2d, w2_p, b2_p))

    out = clip_2fc_forward(x, w1_bf, b1_2d, w2_p, b2_p, d_out=d_out)
    out = jax.block_until_ready(out)
    assert out.shape == (B, D_out)

    # Tight check vs a reference with the same bf16-operand / f32-accumulate math.
    ref_bf = reference_forward_bf16(x, w1, b1, w2, b2)
    assert jnp.allclose(out, ref_bf, atol=2e-3, rtol=2e-3), "mismatch vs bf16 reference"

    # Loose sanity check vs the pure-f32 PyTorch-equivalent math.
    ref_f32 = reference_forward_f32(x, w1, b1, w2, b2)
    assert jnp.allclose(out, ref_f32, atol=5e-2, rtol=5e-2), "mismatch vs f32 reference"

    print("KERNEL_OK")
</pallas_src>

<mosaic_0001>
module attributes {stable_mosaic.version = 11 : i64} {
  func.func @_clip_2fc_kernel(%arg0: i32, %arg1: memref<8x32xf32, #tpu.memory_space<vmem>>, %arg2: memref<32x32xbf16, #tpu.memory_space<vmem>>, %arg3: memref<1x32xf32, #tpu.memory_space<vmem>>, %arg4: memref<32x128xbf16, #tpu.memory_space<vmem>>, %arg5: memref<1x128xf32, #tpu.memory_space<vmem>>, %arg6: memref<8x128xf32, #tpu.memory_space<vmem>>) attributes {dimension_semantics = [#tpu.dimension_semantics<parallel>], iteration_bounds = array<i64: 1>, scalar_prefetch = 0 : i64, scratch_operands = 0 : i64, tpu.core_type = #tpu.core_type<tc>, window_params = [{transform_indices = @transform_0, window_bounds = array<i64: 8, 32>}, {pipeline_mode = #tpu.pipeline_mode<synchronous>, transform_indices = @transform_1, window_bounds = array<i64: 32, 32>}, {pipeline_mode = #tpu.pipeline_mode<synchronous>, transform_indices = @transform_2, window_bounds = array<i64: 1, 32>}, {pipeline_mode = #tpu.pipeline_mode<synchronous>, transform_indices = @transform_3, window_bounds = array<i64: 32, 128>}, {pipeline_mode = #tpu.pipeline_mode<synchronous>, transform_indices = @transform_4, window_bounds = array<i64: 1, 128>}, {transform_indices = @transform_5, window_bounds = array<i64: 8, 128>}]} {
    %c0 = arith.constant 0 : index
    %c0_0 = arith.constant 0 : index
    %0 = vector.load %arg1[%c0, %c0_0] : memref<8x32xf32, #tpu.memory_space<vmem>>, vector<8x32xf32>
    %1 = arith.truncf %0 : vector<8x32xf32> to vector<8x32xbf16>
    %c0_1 = arith.constant 0 : index
    %c0_2 = arith.constant 0 : index
    %2 = vector.load %arg2[%c0_1, %c0_2] : memref<32x32xbf16, #tpu.memory_space<vmem>>, vector<32x32xbf16>
    %cst = arith.constant dense<0.000000e+00> : vector<8x32xf32>
    %3 = tpu.matmul %1, %2, %cst {dimension_numbers = #tpu.dot_dimension_numbers<[1], [0], [0], [1], [0, 0, 1, 1], [], []>} : vector<8x32xbf16>, vector<32x32xbf16>, vector<8x32xf32> -> vector<8x32xf32>
    %c0_3 = arith.constant 0 : index
    %c0_4 = arith.constant 0 : index
    %4 = vector.load %arg3[%c0_3, %c0_4] : memref<1x32xf32, #tpu.memory_space<vmem>>, vector<1x32xf32>
    %5 = vector.broadcast %4 : vector<1x32xf32> to vector<8x32xf32>
    %6 = arith.addf %3, %5 : vector<8x32xf32>
    %cst_5 = arith.constant 0.000000e+00 : f32
    %7 = vector.broadcast %cst_5 : f32 to vector<8x32xf32>
    %8 = arith.maximumf %6, %7 : vector<8x32xf32>
    %9 = arith.truncf %8 : vector<8x32xf32> to vector<8x32xbf16>
    %c0_6 = arith.constant 0 : index
    %c0_7 = arith.constant 0 : index
    %10 = vector.load %arg4[%c0_6, %c0_7] : memref<32x128xbf16, #tpu.memory_space<vmem>>, vector<32x128xbf16>
    %cst_8 = arith.constant dense<0.000000e+00> : vector<8x128xf32>
    %11 = tpu.matmul %9, %10, %cst_8 {dimension_numbers = #tpu.dot_dimension_numbers<[1], [0], [0], [1], [0, 0, 1, 1], [], []>} : vector<8x32xbf16>, vector<32x128xbf16>, vector<8x128xf32> -> vector<8x128xf32>
    %c0_9 = arith.constant 0 : index
    %c0_10 = arith.constant 0 : index
    %12 = vector.load %arg5[%c0_9, %c0_10] : memref<1x128xf32, #tpu.memory_space<vmem>>, vector<1x128xf32>
    %13 = vector.broadcast %12 : vector<1x128xf32> to vector<8x128xf32>
    %14 = arith.addf %11, %13 : vector<8x128xf32>
    %c0_11 = arith.constant 0 : index
    %c0_12 = arith.constant 0 : index
    %15 = vector.load %arg6[%c0_11, %c0_12] : memref<8x128xf32, #tpu.memory_space<vmem>>, vector<8x128xf32>
    tpu.vector_store %arg6[%c0_11, %c0_12], %14 {strides = array<i32>} : memref<8x128xf32, #tpu.memory_space<vmem>>, vector<8x128xf32>,
    return
  }
  func.func @transform_0(%arg0: i32) -> (i32, i32) {
    %c0_i32 = arith.constant 0 : i32
    %c0_i32_0 = arith.constant 0 : i32
    return %arg0, %c0_i32 : i32, i32
  }
  func.func @transform_1(%arg0: i32) -> (i32, i32) {
    %c0_i32 = arith.constant 0 : i32
    %c0_i32_0 = arith.constant 0 : i32
    %c0_i32_1 = arith.constant 0 : i32
    return %c0_i32, %c0_i32_0 : i32, i32
  }
  func.func @transform_2(%arg0: i32) -> (i32, i32) {
    %c0_i32 = arith.constant 0 : i32
    %c0_i32_0 = arith.constant 0 : i32
    %c0_i32_1 = arith.constant 0 : i32
    return %c0_i32, %c0_i32_0 : i32, i32
  }
  func.func @transform_3(%arg0: i32) -> (i32, i32) {
    %c0_i32 = arith.constant 0 : i32
    %c0_i32_0 = arith.constant 0 : i32
    %c0_i32_1 = arith.constant 0 : i32
    return %c0_i32, %c0_i32_0 : i32, i32
  }
  func.func @transform_4(%arg0: i32) -> (i32, i32) {
    %c0_i32 = arith.constant 0 : i32
    %c0_i32_0 = arith.constant 0 : i32
    %c0_i32_1 = arith.constant 0 : i32
    return %c0_i32, %c0_i32_0 : i32, i32
  }
  func.func @transform_5(%arg0: i32) -> (i32, i32) {
    %c0_i32 = arith.constant 0 : i32
    %c0_i32_0 = arith.constant 0 : i32
    return %arg0, %c0_i32 : i32, i32
  }
}

</mosaic_0001>

<llo_original>
// kernel: clip_2fc_forward.1
$region0: #{clip_2fc_forward.1}
  #allocation0 [shape = 'u32[]', space=smem, size = 0x4, offset = 0x4, fixed_abs, tag = 'smem constant byte address 0x4 - core index']
  #allocation1 [shape = 'u32[144,128]{1,0:T(1,128)}', space=vmem, size = 0x12000, scoped, tag = 'internal scratch']
  %s0 = inlined_call_operand.hbm [shape: f32[8,32], index: 0, kind: input, shape index: {}]
  %s1 = inlined_call_operand.hbm [shape: bf16[32,32], index: 1, kind: input, shape index: {}]
  %s2 = inlined_call_operand.vmem [shape: f32[1,32], index: 2, kind: input, shape index: {}]
  %s3 = inlined_call_operand.hbm [shape: bf16[32,128], index: 3, kind: input, shape index: {}]
  %s4 = inlined_call_operand.vmem [shape: f32[1,128], index: 4, kind: input, shape index: {}]
  %s5 = inlined_call_operand.hbm [shape: f32[8,128], index: 5, kind: output, shape index: {}]
  %s6 = sld [smem:[#allocation0]]
  $region42: #{clip_2fc_forward.1} parent=0
    _
  %s8 = ssub.s32 1, %s6
  %s9 = scalar_select 0, %s8, %s6
  $region1: #{clip_2fc_forward.1} parent=0
    #allocation2 [shape = 'u8[4096]{0}', space=vmem, size = 0x1000, scoped, tag = 'input window, operand 0, single buffered']
    #allocation3 [shape = 's32[1]{0}', space=sflag, size = 0x4, scoped, tag = 'scoped memory for clip_2fc_forward.1']
    #allocation4 [shape = 's32[1]{0}', space=sflag, size = 0x4, scoped, tag = 'scoped memory for clip_2fc_forward.1']
    #allocation5 [shape = 'u8[8192]{0}', space=vmem, size = 0x2000, scoped, tag = 'input window, operand 1, single buffered']
    #allocation6 [shape = 's32[1]{0}', space=sflag, size = 0x4, scoped, tag = 'scoped memory for clip_2fc_forward.1']
    #allocation7 [shape = 'u8[8192]{0}', space=vmem, size = 0x2000, scoped, tag = 'input window, operand 3, single buffered']
    #allocation8 [shape = 'u8[4096]{0}', space=vmem, size = 0x1000, scoped, tag = 'output window, operand 0, single buffered']
    %10 = vsyncpa [#allocation3], 0
    %11 = vsyncpa [#allocation6], 0
    %12 = vsyncpa [#allocation4], 0
    // Predicated region
    $region2: #{clip_2fc_forward.1} parent=1 // pred_check
      _
    $region3: #{clip_2fc_forward.1} parent=1 // pred_check_branch
      %14 = sbr.rel (0) target = $region5
    $region4: #{clip_2fc_forward.1} parent=1 // pred_region
      %s16 = ssub.s32 128, 128
      %17 = vsyncadd [#allocation3], %s16
      %s19 = sshll.u32 [#allocation2], 4
      %s20 = int_to_ptr.vmem [resolvable:$true] %s19
      %22 = dma.hbm_to_vmem [thread:$0]  %s0, 128, %s20, [#allocation3]
    $region5: #{clip_2fc_forward.1} parent=1 // pred_fallthru
      _
    // Predicated region
    $region6: #{clip_2fc_forward.1} parent=1 // pred_check
      _
    $region7: #{clip_2fc_forward.1} parent=1 // pred_check_branch
      %24 = sbr.rel (0) target = $region9
    $region8: #{clip_2fc_forward.1} parent=1 // pred_region
      %s26 = ssub.s32 256, 256
      %27 = vsyncadd [#allocation6], %s26
      %s28 = sshll.u32 [#allocation5], 4
      %s29 = int_to_ptr.vmem [resolvable:$true] %s28
      %34 = dma.hbm_to_vmem [thread:$0]  %s1, 256, %s29, [#allocation6], 64, 64, 4
    $region9: #{clip_2fc_forward.1} parent=1 // pred_fallthru
      _
    // Predicated region
    $region10: #{clip_2fc_forward.1} parent=1 // pred_check
      _
    $region11: #{clip_2fc_forward.1} parent=1 // pred_check_branch
      %36 = sbr.rel (0) target = $region13
    $region12: #{clip_2fc_forward.1} parent=1 // pred_region
      _
    $region13: #{clip_2fc_forward.1} parent=1 // pred_fallthru
      _
    // Predicated region
    $region14: #{clip_2fc_forward.1} parent=1 // pred_check
      _
    $region15: #{clip_2fc_forward.1} parent=1 // pred_check_branch
      %38 = sbr.rel (0) target = $region17
    $region16: #{clip_2fc_forward.1} parent=1 // pred_region
      %s40 = ssub.s32 256, 256
      %41 = vsyncadd [#allocation6], %s40
      %s42 = sshll.u32 [#allocation7], 4
      %s43 = int_to_ptr.vmem [resolvable:$true] %s42
      %48 = dma.hbm_to_vmem [thread:$0]  %s3, 256, %s43, [#allocation6], 64, 64, 4
    $region17: #{clip_2fc_forward.1} parent=1 // pred_fallthru
      _
    // Predicated region
    $region18: #{clip_2fc_forward.1} parent=1 // pred_check
      _
    $region19: #{clip_2fc_forward.1} parent=1 // pred_check_branch
      %50 = sbr.rel (0) target = $region21
    $region20: #{clip_2fc_forward.1} parent=1 // pred_region
      _
    $region21: #{clip_2fc_forward.1} parent=1 // pred_fallthru
      _
    // Predicated region
    $region22: #{clip_2fc_forward.1} parent=1 // pred_check
      _
    $region23: #{clip_2fc_forward.1} parent=1 // pred_check_branch
      %52 = sbr.rel (0) target = $region25
    $region24: #{clip_2fc_forward.1} parent=1 // pred_region
      %53 = dma.done [#allocation3], 128
    $region25: #{clip_2fc_forward.1} parent=1 // pred_fallthru
      _
    // Predicated region
    $region26: #{clip_2fc_forward.1} parent=1 // pred_check
      _
    $region27: #{clip_2fc_forward.1} parent=1 // pred_check_branch
      %55 = sbr.rel (0) target = $region29
    $region28: #{clip_2fc_forward.1} parent=1 // pred_region
      %56 = dma.done [#allocation6], 256
    $region29: #{clip_2fc_forward.1} parent=1 // pred_fallthru
      _
    // Predicated region
    $region30: #{clip_2fc_forward.1} parent=1 // pred_check
      _
    $region31: #{clip_2fc_forward.1} parent=1 // pred_check_branch
      %58 = sbr.rel (0) target = $region33
    $region32: #{clip_2fc_forward.1} parent=1 // pred_region
      %59 = dma.done [#allocation6], 256
    $region33: #{clip_2fc_forward.1} parent=1 // pred_fallthru
      _
    %v61 = vld [vmem:[#allocation2] sm:$0xff]
    %v62 = vpack.c.bf16 %v61, %v61
    %v63 = vld [vmem:[#allocation5] sm:$0xf]
    %v64 = vld [vmem:[#allocation5 + $0x4] sm:$0xf]
    %v65 = vld [vmem:[#allocation5 + $0x8] sm:$0xf]
    %v66 = vld [vmem:[#allocation5 + $0xc] sm:$0xf]
    %v67 = vld [vmem:[%s2] sm:$0x1]
    %v69 = vlaneseq
    %v70 = vshrl.u32 %v69, 7
    %v71 = vsub.s32 0, %v70
    %v72 = vrot.slane %v67, %v71
    %v78 = vunpack.c.l.b16 %v63
    %v79 = vunpack.c.l.b16 %v64
    %v80 = vunpack.c.l.b16 %v65
    %v81 = vunpack.c.l.b16 %v66
    %v82 = vpack.c.b16 %v79, %v78
    %v83 = vpack.c.b16 %v81, %v80
    %vm86 = vcmask 261120
    %v88 = vsel %vm86, %v62, 0
    %90 = vmatprep.subr.bf16.mxu0 0
    %91 = vmatpush1.bf16.msra.mxu0 0
    %92 = vmatprep.subr.bf16.mxu0 0
    %93 = vmatpush1.bf16.msra.mxu0 0
    %94 = vmatprep.subr.bf16.mxu0 0
    %95 = vmatpush1.bf16.msra.mxu0 0
    %96 = vmatprep.subr.bf16.mxu0 0
    %97 = vmatpush1.bf16.msra.mxu0 0
    %98 = vmatprep.subr.bf16.mxu0 0
    %99 = vmatpush1.bf16.msra.mxu0 0
    %100 = vmatprep.subr.bf16.mxu0 0
    %101 = vmatpush1.bf16.msra.mxu0 0
    %102 = vmatprep.subr.bf16.mxu0 0
    %103 = vmatpush1.bf16.msra.mxu0 %v83
    %104 = vmatprep.subr.bf16.mxu0 0
    %105 = vmatpush1.bf16.msra.mxu0 %v82
    %106 = vmatprep.subr.bf16.mxu0 0
    %107 = vmatpush2.bf16.msra.mxu0 0
    %108 = vmatprep.subr.bf16.mxu0 0
    %109 = vmatpush2.bf16.msra.mxu0 0
    %110 = vmatprep.subr.bf16.mxu0 0
    %111 = vmatpush2.bf16.msra.mxu0 0
    %112 = vmatprep.subr.bf16.mxu0 0
    %113 = vmatpush2.bf16.msra.mxu0 0
    %114 = vmatprep.subr.bf16.mxu0 0
    %115 = vmatpush2.bf16.msra.mxu0 0
    %116 = vmatprep.subr.bf16.mxu0 0
    %117 = vmatpush2.bf16.msra.mxu0 0
    %118 = vmatprep.subr.bf16.mxu0 0
    %119 = vmatpush2.bf16.msra.mxu0 0
    %120 = vmatprep.subr.bf16.mxu0 0
    %121 = vmatpush2.bf16.msra.mxu0 0
    %122 = vmatprep.mubr.bf16.mxu0 0
    %123 = vmatmul.mubr.bf16.gmra.mxu0 %v88
    %v124 = vpop.f32.mrf.mxu0
    %v125 = vadd.f32 %v72, %v124
    %v126 = vpop.f32.mrf.mxu0
    %v127 = vpop.f32.mrf.mxu0
    %v128 = vpop.f32.mrf.mxu0
    %129 = vdwg.mxu0
    %v130 = vmax.f32 %v125, 0.0
    %v131 = vpack.c.bf16 %v130, %v130
    %v132 = vld [vmem:[#allocation7] sm:$0xf]
    %v133 = vld [vmem:[#allocation7 + $0x4] sm:$0xf]
    %v134 = vld [vmem:[#allocation7 + $0x8] sm:$0xf]
    %v135 = vld [vmem:[#allocation7 + $0xc] sm:$0xf]
    %v136 = vld [vmem:[%s4] sm:$0x1]
    %v138 = vlaneseq
    %v139 = vshrl.u32 %v138, 7
    %v140 = vsub.s32 0, %v139
    %v141 = vrot.slane %v136, %v140
    %v147 = vunpack.c.l.b16 %v132
    %v148 = vunpack.c.l.b16 %v133
    %v149 = vunpack.c.l.b16 %v134
    %v150 = vunpack.c.l.b16 %v135
    %v151 = vpack.c.b16 %v148, %v147
    %v152 = vpack.c.b16 %v150, %v149
    %v156 = vsel %vm86, %v131, 0
    %158 = vmatprep.subr.bf16.mxu0 0
    %159 = vmatpush1.bf16.msra.mxu0 0
    %160 = vmatprep.subr.bf16.mxu0 0
    %161 = vmatpush1.bf16.msra.mxu0 0
    %162 = vmatprep.subr.bf16.mxu0 0
    %163 = vmatpush1.bf16.msra.mxu0 0
    %164 = vmatprep.subr.bf16.mxu0 0
    %165 = vmatpush1.bf16.msra.mxu0 0
    %166 = vmatprep.subr.bf16.mxu0 0
    %167 = vmatpush1.bf16.msra.mxu0 0
    %168 = vmatprep.subr.bf16.mxu0 0
    %169 = vmatpush1.bf16.msra.mxu0 0
    %170 = vmatprep.subr.bf16.mxu0 0
    %171 = vmatpush1.bf16.msra.mxu0 %v152
    %172 = vmatprep.subr.bf16.mxu0 0
    %173 = vmatpush1.bf16.msra.mxu0 %v151
    %174 = vmatprep.subr.bf16.mxu0 0
    %175 = vmatpush2.bf16.msra.mxu0 0
    %176 = vmatprep.subr.bf16.mxu0 0
    %177 = vmatpush2.bf16.msra.mxu0 0
    %178 = vmatprep.subr.bf16.mxu0 0
    %179 = vmatpush2.bf16.msra.mxu0 0
    %180 = vmatprep.subr.bf16.mxu0 0
    %181 = vmatpush2.bf16.msra.mxu0 0
    %182 = vmatprep.subr.bf16.mxu0 0
    %183 = vmatpush2.bf16.msra.mxu0 0
    %184 = vmatprep.subr.bf16.mxu0 0
    %185 = vmatpush2.bf16.msra.mxu0 0
    %186 = vmatprep.subr.bf16.mxu0 0
    %187 = vmatpush2.bf16.msra.mxu0 0
    %188 = vmatprep.subr.bf16.mxu0 0
    %189 = vmatpush2.bf16.msra.mxu0 0
    %190 = vmatprep.mubr.bf16.mxu0 0
    %191 = vmatmul.mubr.bf16.gmra.mxu0 %v156
    %v192 = vpop.f32.mrf.mxu0
    %v193 = vadd.f32 %v141, %v192
    %v194 = vpop.f32.mrf.mxu0
    %v195 = vpop.f32.mrf.mxu0
    %v196 = vpop.f32.mrf.mxu0
    %197 = vdwg.mxu0
    %198 = vst [vmem:[#allocation8] sm:$0xff] %v193
    // Predicated region
    $region34: #{clip_2fc_forward.1} parent=1 // pred_check
      _
    $region35: #{clip_2fc_forward.1} parent=1 // pred_check_branch
      %200 = sbr.rel (0) target = $region37
    $region36: #{clip_2fc_forward.1} parent=1 // pred_region
      %s202 = ssub.s32 128, 128
      %203 = vsyncadd [#allocation4], %s202
      %s205 = sshll.u32 [#allocation8], 4
      %s206 = int_to_ptr.vmem [resolvable:$true] %s205
      %208 = dma.vmem_to_hbm [thread:$0]  %s206, 128, %s5, [#allocation4]
    $region37: #{clip_2fc_forward.1} parent=1 // pred_fallthru
      _
    // Predicated region
    $region38: #{clip_2fc_forward.1} parent=1 // pred_check
      _
    $region39: #{clip_2fc_forward.1} parent=1 // pred_check_branch
      %210 = sbr.rel (0) target = $region41
    $region40: #{clip_2fc_forward.1} parent=1 // pred_region
      %211 = dma.done [#allocation4], 128
    $region41: #{clip_2fc_forward.1} parent=1 // pred_fallthru
      _
    %212 = vsyncpa [#allocation3], 1
    %213 = vsyncpa [#allocation6], 1
    %214 = vsyncpa [#allocation4], 1

</llo_original>
